<compile_context>
chip_gen: v7x
topology: tpu7x:2x2x1
jax: 0.10.0
libtpu: 0.0.40
codegen_flags: <defaults>
</compile_context>

<pallas_src>
import functools

import jax
import jax.numpy as jnp
from jax.experimental import pallas as pl
from jax.experimental.pallas import tpu as pltpu


def cfn_kernel(wt_ref, x_ref, out_ref, *, n_state):
    # x:  (1, K) with K = n_state + n_action + 1  (last entry is the constant 1)
    # wt: (K, 3*n_state)   packed [zt_pre | it_pre | wa@action] columns
    x = x_ref[...]
    y = jnp.dot(x, wt_ref[...], preferred_element_type=jnp.float32)  # (1, 3n)

    zt = jnp.tanh(y[:, 0:n_state])
    it = jnp.tanh(y[:, n_state:2 * n_state])
    wa_a = y[:, 2 * n_state:3 * n_state]
    state_row = x[:, 0:n_state]                       # state lives in x's prefix

    next_state = zt * jnp.tanh(state_row) + it * jnp.tanh(wa_a)
    out_ref[...] = next_state.astype(out_ref.dtype)


def _pack_weights(uz, ui, wa, wi, wz, bz, bi):
    """Fuse all weights/biases into one (K, 3*n_state) matrix (done in XLA)."""
    n_state = uz.shape[0]
    z_cols = jnp.concatenate(
        [uz.T, wz.T, jnp.full((1, n_state), bz[0, 0], jnp.float32)], axis=0)
    i_cols = jnp.concatenate(
        [ui.T, wi.T, jnp.full((1, n_state), bi[0, 0], jnp.float32)], axis=0)
    a_cols = jnp.concatenate(
        [jnp.zeros((n_state, n_state), jnp.float32), wa.T,
         jnp.zeros((1, n_state), jnp.float32)], axis=0)
    return jnp.concatenate([z_cols, i_cols, a_cols], axis=1).astype(jnp.float32)


def cfn_forward(uz, ui, wa, wi, wz, bz, bi, state, action):
    n_state = uz.shape[0]

    wt = _pack_weights(uz, ui, wa, wi, wz, bz, bi)      # (K, 3*n_state)
    x_row = jnp.concatenate(
        [state.T, action.T, jnp.ones((1, 1), jnp.float32)], axis=1)  # (1, K)

    vmem_spec = pl.BlockSpec(memory_space=pltpu.MemorySpace.VMEM)

    out_row = pl.pallas_call(
        functools.partial(cfn_kernel, n_state=n_state),
        out_shape=jax.ShapeDtypeStruct((1, n_state), jnp.float32),
        in_specs=[vmem_spec, vmem_spec],
        out_specs=vmem_spec,
    )(wt, x_row)

    # Back to the PyTorch column-vector layout.
    return out_row.T                                     # (n_state, 1)

    # TODO(synk): if CFN is unrolled over time/batch, hoist that loop into the
    # kernel (weights resident in VMEM, batch on lanes) to amortize launch/DMA.


def cfn_reference(uz, ui, wa, wi, wz, bz, bi, state, action):
    zt = jnp.tanh(uz @ state + wz @ action + bz)
    it = jnp.tanh(ui @ state + wi @ action + bi)
    return zt * jnp.tanh(state) + it * jnp.tanh(wa @ action)


if __name__ == "__main__":
    n_state, n_action = 10, 4   # init_state() implies n_state == 10

    key = jax.random.PRNGKey(0)
    ks = jax.random.split(key, 9)
    std = 0.35
    uz = std * jax.random.normal(ks[0], (n_state, n_state), jnp.float32)
    ui = std * jax.random.normal(ks[1], (n_state, n_state), jnp.float32)
    wa = std * jax.random.normal(ks[2], (n_state, n_action), jnp.float32)
    wi = std * jax.random.normal(ks[3], (n_state, n_action), jnp.float32)
    wz = std * jax.random.normal(ks[4], (n_state, n_action), jnp.float32)
    bz = std * jax.random.normal(ks[5], (1, 1), jnp.float32)
    bi = std * jax.random.normal(ks[6], (1, 1), jnp.float32)

    state = jnp.zeros((n_state, 1), jnp.float32)          # init_state()
    state = state + 0.1 * jax.random.normal(ks[7], (n_state, 1), jnp.float32)
    action = jax.random.normal(ks[8], (n_action, 1), jnp.float32)

    out = cfn_forward(uz, ui, wa, wi, wz, bz, bi, state, action)
    out = jax.block_until_ready(out)

    ref = cfn_reference(uz, ui, wa, wi, wz, bz, bi, state, action)
    assert out.shape == (n_state, 1)
    assert jnp.allclose(out, ref, atol=1e-5, rtol=1e-5), (out, ref)

    print("KERNEL_OK")
</pallas_src>

<mosaic_0001>
module attributes {stable_mosaic.version = 11 : i64} {
  func.func @cfn_kernel(%arg0: memref<15x30xf32, #tpu.memory_space<vmem>>, %arg1: memref<1x15xf32, #tpu.memory_space<vmem>>, %arg2: memref<1x10xf32, #tpu.memory_space<vmem>>) attributes {dimension_semantics = [], scalar_prefetch = 0 : i64, scratch_operands = 0 : i64, tpu.core_type = #tpu.core_type<tc>} {
    %c0 = arith.constant 0 : index
    %c0_0 = arith.constant 0 : index
    %0 = vector.load %arg1[%c0, %c0_0] : memref<1x15xf32, #tpu.memory_space<vmem>>, vector<1x15xf32>
    %c0_1 = arith.constant 0 : index
    %c0_2 = arith.constant 0 : index
    %1 = vector.load %arg0[%c0_1, %c0_2] : memref<15x30xf32, #tpu.memory_space<vmem>>, vector<15x30xf32>
    %cst = arith.constant dense<0.000000e+00> : vector<1x30xf32>
    %2 = tpu.matmul %0, %1, %cst {dimension_numbers = #tpu.dot_dimension_numbers<[1], [0], [0], [1], [0, 0, 1, 1], [], []>} : vector<1x15xf32>, vector<15x30xf32>, vector<1x30xf32> -> vector<1x30xf32>
    %3 = vector.extract_strided_slice %2 {offsets = [0, 0], sizes = [1, 10], strides = [1, 1]} : vector<1x30xf32> to vector<1x10xf32>
    %4 = math.tanh %3 : vector<1x10xf32>
    %5 = vector.extract_strided_slice %2 {offsets = [0, 10], sizes = [1, 10], strides = [1, 1]} : vector<1x30xf32> to vector<1x10xf32>
    %6 = math.tanh %5 : vector<1x10xf32>
    %7 = vector.extract_strided_slice %2 {offsets = [0, 20], sizes = [1, 10], strides = [1, 1]} : vector<1x30xf32> to vector<1x10xf32>
    %8 = vector.extract_strided_slice %0 {offsets = [0, 0], sizes = [1, 10], strides = [1, 1]} : vector<1x15xf32> to vector<1x10xf32>
    %9 = math.tanh %8 : vector<1x10xf32>
    %10 = arith.mulf %4, %9 : vector<1x10xf32>
    %11 = math.tanh %7 : vector<1x10xf32>
    %12 = arith.mulf %6, %11 : vector<1x10xf32>
    %13 = arith.addf %10, %12 : vector<1x10xf32>
    %c0_3 = arith.constant 0 : index
    %c0_4 = arith.constant 0 : index
    %14 = vector.load %arg2[%c0_3, %c0_4] : memref<1x10xf32, #tpu.memory_space<vmem>>, vector<1x10xf32>
    tpu.vector_store %arg2[%c0_3, %c0_4], %13 {strides = array<i32>} : memref<1x10xf32, #tpu.memory_space<vmem>>, vector<1x10xf32>,
    return
  }
}

</mosaic_0001>

<llo_original>
// kernel: tpu_custom_call.1
$region0: #{tpu_custom_call.1}
  #allocation0 [shape = 'u32[]', space=smem, size = 0x4, offset = 0x4, fixed_abs, tag = 'smem constant byte address 0x4 - core index']
  #allocation1 [shape = 'u32[144,128]{1,0:T(1,128)}', space=vmem, size = 0x12000, scoped, tag = 'internal scratch']
  %s0 = inlined_call_operand.hbm [shape: f32[15,30], index: 0, kind: input, shape index: {}]
  %s1 = inlined_call_operand.vmem [shape: f32[1,15], index: 1, kind: input, shape index: {}]
  %s2 = inlined_call_operand.hbm [shape: f32[1,10], index: 2, kind: output, shape index: {}]
  %s3 = sld [smem:[#allocation0]]
  $region22: #{tpu_custom_call.1} parent=0
    _
  %s5 = ssub.s32 1, %s3
  %s6 = scalar_select 0, %s5, %s3
  $region1: #{tpu_custom_call.1} parent=0
    #allocation2 [shape = 'u8[8192]{0}', space=vmem, size = 0x2000, scoped, tag = 'input window, operand 0, single buffered']
    #allocation3 [shape = 's32[1]{0}', space=sflag, size = 0x4, scoped, tag = 'scoped memory for tpu_custom_call.1']
    #allocation4 [shape = 's32[1]{0}', space=sflag, size = 0x4, scoped, tag = 'scoped memory for tpu_custom_call.1']
    #allocation5 [shape = 'u8[512]{0}', space=vmem, size = 0x400, scoped, tag = 'output window, operand 0, single buffered']
    %7 = vsyncpa [#allocation3], 0
    %8 = vsyncpa [#allocation4], 0
    // Predicated region
    $region2: #{tpu_custom_call.1} parent=1 // pred_check
      _
    $region3: #{tpu_custom_call.1} parent=1 // pred_check_branch
      %10 = sbr.rel (0) target = $region5
    $region4: #{tpu_custom_call.1} parent=1 // pred_region
      %s12 = ssub.s32 256, 256
      %13 = vsyncadd [#allocation3], %s12
      %s14 = sshll.u32 [#allocation2], 4
      %s15 = int_to_ptr.vmem [resolvable:$true] %s14
      %20 = dma.hbm_to_vmem [thread:$0]  %s0, 256, %s15, [#allocation3], 128, 128, 8
    $region5: #{tpu_custom_call.1} parent=1 // pred_fallthru
      _
    // Predicated region
    $region6: #{tpu_custom_call.1} parent=1 // pred_check
      _
    $region7: #{tpu_custom_call.1} parent=1 // pred_check_branch
      %22 = sbr.rel (0) target = $region9
    $region8: #{tpu_custom_call.1} parent=1 // pred_region
      _
    $region9: #{tpu_custom_call.1} parent=1 // pred_fallthru
      _
    // Predicated region
    $region10: #{tpu_custom_call.1} parent=1 // pred_check
      _
    $region11: #{tpu_custom_call.1} parent=1 // pred_check_branch
      %24 = sbr.rel (0) target = $region13
    $region12: #{tpu_custom_call.1} parent=1 // pred_region
      %25 = dma.done [#allocation3], 256
    $region13: #{tpu_custom_call.1} parent=1 // pred_fallthru
      _
    %v26 = vld [vmem:[%s1] sm:$0x1]
    %v27 = vld [vmem:[#allocation2] sm:$0xff]
    %v28 = vld [vmem:[#allocation2 + $0x8] sm:$0x7f]
    %vm29 = vcmask 121856
    %v31 = vsel %vm29, %v26, 0
    %vm33 = vcmask 1046528
    %v35 = vsel %vm33, %v28, 0
    %37 = vmatprep.subr.mxu0 0.0
    %38 = vmatpush1.msra.mxu0 %v27
    %39 = vmatprep.subr.mxu0 0.0
    %40 = vmatpush1.msra.mxu0 %v35
    %41 = vmatprep.subr.mxu0 0.0
    %42 = vmatpush1.msra.mxu0 0.0
    %43 = vmatprep.subr.mxu0 0.0
    %44 = vmatpush1.msra.mxu0 0.0
    %45 = vmatprep.subr.mxu0 0.0
    %46 = vmatpush1.msra.mxu0 0.0
    %47 = vmatprep.subr.mxu0 0.0
    %48 = vmatpush1.msra.mxu0 0.0
    %49 = vmatprep.subr.mxu0 0.0
    %50 = vmatpush1.msra.mxu0 0.0
    %51 = vmatprep.subr.mxu0 0.0
    %52 = vmatpush1.msra.mxu0 0.0
    %53 = vmatprep.subr.mxu0 0.0
    %54 = vmatpush1.msra.mxu0 0.0
    %55 = vmatprep.subr.mxu0 0.0
    %56 = vmatpush1.msra.mxu0 0.0
    %57 = vmatprep.subr.mxu0 0.0
    %58 = vmatpush1.msra.mxu0 0.0
    %59 = vmatprep.subr.mxu0 0.0
    %60 = vmatpush1.msra.mxu0 0.0
    %61 = vmatprep.subr.mxu0 0.0
    %62 = vmatpush1.msra.mxu0 0.0
    %63 = vmatprep.subr.mxu0 0.0
    %64 = vmatpush1.msra.mxu0 0.0
    %65 = vmatprep.subr.mxu0 0.0
    %66 = vmatpush1.msra.mxu0 0.0
    %67 = vmatprep.subr.mxu0 0.0
    %68 = vmatpush1.msra.mxu0 0.0
    %69 = vmatprep.subr.mxu0 0.0
    %70 = vmatpush1.msra.mxu0 0.0
    %71 = vmatprep.subr.mxu0 0.0
    %72 = vmatpush1.msra.mxu0 0.0
    %73 = vmatprep.subr.mxu0 0.0
    %74 = vmatpush1.msra.mxu0 0.0
    %75 = vmatprep.subr.mxu0 0.0
    %76 = vmatpush1.msra.mxu0 0.0
    %77 = vmatprep.subr.mxu0 0.0
    %78 = vmatpush1.msra.mxu0 0.0
    %79 = vmatprep.subr.mxu0 0.0
    %80 = vmatpush1.msra.mxu0 0.0
    %81 = vmatprep.subr.mxu0 0.0
    %82 = vmatpush1.msra.mxu0 0.0
    %83 = vmatprep.subr.mxu0 0.0
    %84 = vmatpush1.msra.mxu0 0.0
    %85 = vmatprep.subr.mxu0 0.0
    %86 = vmatpush1.msra.mxu0 0.0
    %87 = vmatprep.subr.mxu0 0.0
    %88 = vmatpush1.msra.mxu0 0.0
    %89 = vmatprep.subr.mxu0 0.0
    %90 = vmatpush1.msra.mxu0 0.0
    %91 = vmatprep.subr.mxu0 0.0
    %92 = vmatpush1.msra.mxu0 0.0
    %93 = vmatprep.subr.mxu0 0.0
    %94 = vmatpush1.msra.mxu0 0.0
    %95 = vmatprep.subr.mxu0 0.0
    %96 = vmatpush1.msra.mxu0 0.0
    %97 = vmatprep.subr.mxu0 0.0
    %98 = vmatpush1.msra.mxu0 0.0
    %99 = vmatprep.subr.mxu0 0.0
    %100 = vmatpush1.msra.mxu0 0.0
    %101 = vmatprep.mubr.f32.mxu0 0.0
    %102 = vmatmul.mubr.f32.gmra.mrb[0].mxu0 %v31
    %v103 = vpop.f32.mrb[0].mxu0
    %v104 = vadd.f32 0.0, %v103
    %v105 = vpop.f32.mrb[0].mxu0
    %106 = vdwg.mxu0
    %v107 = vtanh.pop %v104
    %v108 = vtanh.pop %v26
    %v109 = vmul.f32 %v107, %v108
    %111 = vrot.lane.b32.xlu0 %v107, 118
    %v112 = vpop.permute.xlu0 %111
    %v114 = vmul.f32 %v107, %v112
    %116 = vrot.lane.b32.xlu0 %v114, 118
    %v117 = vpop.permute.xlu0 %116
    %v119 = vadd.f32 %v109, %v117
    %vm120 = vcmask 73728
    %121 = vst.msk [vmem:[#allocation5] sm:$0x1] %vm120, %v119
    // Predicated region
    $region14: #{tpu_custom_call.1} parent=1 // pred_check
      _
    $region15: #{tpu_custom_call.1} parent=1 // pred_check_branch
      %123 = sbr.rel (0) target = $region17
    $region16: #{tpu_custom_call.1} parent=1 // pred_region
      %s125 = ssub.s32 16, 16
      %126 = vsyncadd [#allocation4], %s125
      %s128 = sshll.u32 [#allocation5], 4
      %s129 = int_to_ptr.vmem [resolvable:$true] %s128
      %131 = dma.vmem_to_hbm [thread:$0]  %s129, 16, %s2, [#allocation4]
    $region17: #{tpu_custom_call.1} parent=1 // pred_fallthru
      _
    // Predicated region
    $region18: #{tpu_custom_call.1} parent=1 // pred_check
      _
    $region19: #{tpu_custom_call.1} parent=1 // pred_check_branch
      %133 = sbr.rel (0) target = $region21
    $region20: #{tpu_custom_call.1} parent=1 // pred_region
      %134 = dma.done [#allocation4], 16
    $region21: #{tpu_custom_call.1} parent=1 // pred_fallthru
      _
    %135 = vsyncpa [#allocation3], 1
    %136 = vsyncpa [#allocation4], 1

</llo_original>
